<compile_context>
chip_gen: v5e
topology: v5e:2x2
jax: 0.10.0
libtpu: 0.0.40
codegen_flags: <defaults>
</compile_context>

<pallas_src>
import functools
import math

import jax
import jax.numpy as jnp
from jax import lax
from jax.experimental import pallas as pl
from jax.experimental.pallas import tpu as pltpu


def _make_pe_table(d_model, max_len=5000, dtype=jnp.float32):
    """Reference sinusoidal table, identical to the PyTorch __init__ (testing only)."""
    position = jnp.arange(max_len, dtype=jnp.float32)[:, None]                  # (L, 1)
    div_term = jnp.exp(jnp.arange(0, d_model, 2, dtype=jnp.float32)
                       * (-math.log(10000.0) / d_model))                        # (D/2,)
    pe = jnp.zeros((max_len, d_model), dtype=jnp.float32)
    pe = pe.at[:, 0::2].set(jnp.sin(position * div_term))
    pe = pe.at[:, 1::2].set(jnp.cos(position * div_term))
    return pe[:, None, :].astype(dtype)                                         # (L, 1, D)


def _pe_tile(tile_rows, ncols, *, d_model, rows_per_pos):
    """Sinusoidal PE for this grid step's (tile_rows, ncols) slab, built from iotas.

    rows_per_pos == batch -> slab (seq*batch, d_model): pos = row // batch, d = col
    rows_per_pos == 1     -> slab (seq, batch*d_model): pos = row,          d = col % d_model
    """
    row0 = pl.program_id(0) * tile_rows
    row = row0 + lax.broadcasted_iota(jnp.int32, (tile_rows, 1), 0)             # (TR, 1)
    pos_i = row if rows_per_pos == 1 else row // rows_per_pos                   # exact int32
    pos = pos_i.astype(jnp.float32)                                             # (TR, 1)
    col = lax.broadcasted_iota(jnp.int32, (1, ncols), 1)                        # (1, C)
    d = col if ncols == d_model else col % d_model                              # (1, C)
    odd = jnp.bitwise_and(d, 1)
    inv_freq = jnp.exp((d - odd).astype(jnp.float32)
                       * (-math.log(10000.0) / d_model))                        # (1, C)
    angle = pos * inv_freq                                                      # (TR, C)
    return jnp.where(odd == 1, jnp.cos(angle), jnp.sin(angle))


def _pe_add_kernel(x_ref, o_ref, *, d_model, rows_per_pos):
    tr, nc = x_ref.shape
    pe = _pe_tile(tr, nc, d_model=d_model, rows_per_pos=rows_per_pos)
    o_ref[...] = (x_ref[...].astype(jnp.float32) + pe).astype(o_ref.dtype)


def _pe_add_dropout_kernel(x_ref, keep_ref, o_ref, *, d_model, rows_per_pos, p):
    tr, nc = x_ref.shape
    pe = _pe_tile(tr, nc, d_model=d_model, rows_per_pos=rows_per_pos)
    y = x_ref[...].astype(jnp.float32) + pe
    keep = keep_ref[...] != 0                                                   # uint8 -> bool
    y = jnp.where(keep, y * jnp.float32(1.0 / (1.0 - p)), jnp.zeros_like(y))
    o_ref[...] = y.astype(o_ref.dtype)


def _sublane_mult(itemsize):
    # Rows per native sublane tile: f32 -> 8, bf16 -> 16, int8/uint8 -> 32.
    return 32 // max(1, min(4, itemsize))


def _choose_row_tile(n_rows, row_bytes, mult, target_tile_bytes, min_grid_steps=4):
    """Rows per grid step: ~target_tile_bytes per x buffer, sublane-aligned, and capped
    so the grid keeps >= min_grid_steps steps (v7x megacore sharding)."""
    rows = target_tile_bytes // max(1, row_bytes)
    rows = max(mult, (rows // mult) * mult)
    cap = ((n_rows // min_grid_steps) // mult) * mult
    if cap >= mult:
        rows = min(rows, cap)
    return min(rows, n_rows)


def positional_encoding(x, *, dropout_p=0.1, training=False, rng=None, max_len=5000,
                        target_tile_bytes=2 * 1024 * 1024, row_tile=None,
                        donate_x=False):
    """Forward of PositionalEncoding: dropout(x + pe[:S]).  x: (seq, batch, d_model)."""
    S, B, D = x.shape
    if S > max_len:
        raise ValueError(f"sequence length {S} exceeds max_len {max_len}")

    if training and dropout_p >= 1.0:
        return jnp.zeros_like(x)

    # Lane-dense slab layout (free reshape). Narrow models fold batch into the lanes.
    if D >= 128:
        n_rows, ncols, rows_per_pos = S * B, D, B
    else:
        n_rows, ncols, rows_per_pos = S, B * D, 1
    x2 = x.reshape(n_rows, ncols)

    use_dropout = training and dropout_p > 0.0
    mult = _sublane_mult(x.dtype.itemsize)
    if use_dropout:
        mult = max(mult, _sublane_mult(1))          # uint8 mask: 32-row sublane tiles
    if row_tile is None:
        tr = _choose_row_tile(n_rows, ncols * x.dtype.itemsize, mult, target_tile_bytes)
    else:
        tr = min(int(row_tile), n_rows)             # test/benchmark override

    grid = (pl.cdiv(n_rows, tr),)
    spec = pl.BlockSpec((tr, ncols), lambda i: (i, 0))
    out_shape = jax.ShapeDtypeStruct((n_rows, ncols), x.dtype)
    cparams = pltpu.CompilerParams(dimension_semantics=("parallel",))
    aliases = {0: 0} if donate_x else {}            # optional in-place-style output

    if use_dropout:
        if rng is None:
            rng = jax.random.PRNGKey(0)
        # uint8 keep-mask (1 B/elem HBM stream); deterministic per key and independent
        # of the kernel tiling.
        keep = jax.random.bernoulli(rng, 1.0 - float(dropout_p), (S, B, D))
        keep_u8 = keep.astype(jnp.uint8).reshape(n_rows, ncols)
        kernel = functools.partial(_pe_add_dropout_kernel, d_model=D,
                                   rows_per_pos=rows_per_pos, p=float(dropout_p))
        out2 = pl.pallas_call(
            kernel, out_shape=out_shape, grid=grid,
            in_specs=[spec, spec], out_specs=spec,
            input_output_aliases=aliases, compiler_params=cparams,
        )(x2, keep_u8)
    else:
        kernel = functools.partial(_pe_add_kernel, d_model=D, rows_per_pos=rows_per_pos)
        out2 = pl.pallas_call(
            kernel, out_shape=out_shape, grid=grid,
            in_specs=[spec], out_specs=spec,
            input_output_aliases=aliases, compiler_params=cparams,
        )(x2)

    return out2.reshape(S, B, D)


if __name__ == "__main__":
    d_model, max_len = 32, 64
    S, B = 8, 4

    key = jax.random.PRNGKey(0)
    x = jax.random.normal(key, (S, B, d_model), dtype=jnp.float32)

    pe_table = _make_pe_table(d_model, max_len)                   # reference only
    ref = x + pe_table[:S]

    # 1) Eval mode (dropout == identity); d_model < 128 -> (S, B*D) lane layout.
    y = positional_encoding(x, dropout_p=0.1, training=False, max_len=max_len)
    jax.block_until_ready(y)
    assert y.shape == (S, B, d_model)
    assert jnp.allclose(y, ref, atol=1e-5, rtol=1e-5), "eval output mismatch"

    # 2) Training mode: uint8 keep-mask reproduced exactly from the same key.
    drop_key = jax.random.PRNGKey(1)
    y_tr = positional_encoding(x, dropout_p=0.1, training=True, rng=drop_key,
                               max_len=max_len)
    jax.block_until_ready(y_tr)
    keep = jax.random.bernoulli(drop_key, 1.0 - 0.1, (S, B, d_model))
    inv_keep = jnp.float32(1.0 / (1.0 - 0.1))
    expected = jnp.where(keep, ref * inv_keep, 0.0)
    assert y_tr.shape == x.shape
    assert jnp.allclose(y_tr, expected, atol=1e-5, rtol=1e-5), "training output mismatch"

    # 3) Wide-model path ((S*B, D) layout) with a non-divisible tail block
    #    (n_rows=24, row_tile=16 -> blocks of 16 and 8+padding).
    S2, B2, D2 = 12, 2, 128
    x_w = jax.random.normal(jax.random.PRNGKey(2), (S2, B2, D2), dtype=jnp.float32)
    ref_w = x_w + _make_pe_table(D2, max_len)[:S2]
    y_w = positional_encoding(x_w, dropout_p=0.1, training=False, max_len=max_len,
                              row_tile=16)
    jax.block_until_ready(y_w)
    assert jnp.allclose(y_w, ref_w, atol=1e-5, rtol=1e-5), "wide / tail-block mismatch"

    print("KERNEL_OK")
</pallas_src>

<mosaic_0001>
module attributes {stable_mosaic.version = 11 : i64} {
  func.func @_pe_add_kernel(%arg0: i32, %arg1: memref<8x128xf32, #tpu.memory_space<vmem>>, %arg2: memref<8x128xf32, #tpu.memory_space<vmem>>) attributes {dimension_semantics = [#tpu.dimension_semantics<parallel>], iteration_bounds = array<i64: 1>, scalar_prefetch = 0 : i64, scratch_operands = 0 : i64, tpu.core_type = #tpu.core_type<tc>, window_params = [{transform_indices = @transform_0, window_bounds = array<i64: 8, 128>}, {transform_indices = @transform_1, window_bounds = array<i64: 8, 128>}]} {
    %c8_i32 = arith.constant 8 : i32
    %0 = arith.muli %arg0, %c8_i32 : i32
    %1 = tpu.iota {dimensions = array<i32: 0>} : vector<8x1xi32>
    %2 = vector.broadcast %0 : i32 to vector<8x1xi32>
    %3 = arith.addi %2, %1 : vector<8x1xi32>
    %4 = arith.sitofp %3 : vector<8x1xi32> to vector<8x1xf32>
    %5 = tpu.iota {dimensions = array<i32: 1>} : vector<1x128xi32>
    %c32_i32 = arith.constant 32 : i32
    %c0_i32 = arith.constant 0 : i32
    %6 = arith.cmpi eq, %c32_i32, %c0_i32 : i32
    %c1_i32 = arith.constant 1 : i32
    %7 = arith.select %6, %c1_i32, %c32_i32 : i32
    %8 = vector.broadcast %7 : i32 to vector<1x128xi32>
    %9 = arith.remsi %5, %8 : vector<1x128xi32>
    %c0_i32_0 = arith.constant 0 : i32
    %10 = vector.broadcast %c0_i32_0 : i32 to vector<1x128xi32>
    %11 = arith.cmpi ne, %9, %10 : vector<1x128xi32>
    %c0_i32_1 = arith.constant 0 : i32
    %12 = vector.broadcast %c0_i32_1 : i32 to vector<1x128xi32>
    %13 = arith.cmpi slt, %9, %12 : vector<1x128xi32>
    %c0_i32_2 = arith.constant 0 : i32
    %14 = arith.cmpi slt, %7, %c0_i32_2 : i32
    %15 = vector.broadcast %14 : i1 to vector<1x128xi1>
    %16 = vector.broadcast %15 : vector<1x128xi1> to vector<1x128xi1>
    %17 = arith.xori %13, %16 : vector<1x128xi1>
    %18 = arith.andi %17, %11 : vector<1x128xi1>
    %19 = vector.broadcast %7 : i32 to vector<1x128xi32>
    %20 = arith.addi %9, %19 : vector<1x128xi32>
    %21 = arith.select %18, %20, %9 : vector<1x128xi1>, vector<1x128xi32>
    %c1_i32_3 = arith.constant 1 : i32
    %22 = vector.broadcast %c1_i32_3 : i32 to vector<1x128xi32>
    %23 = arith.andi %21, %22 : vector<1x128xi32>
    %24 = arith.subi %21, %23 : vector<1x128xi32>
    %25 = arith.sitofp %24 : vector<1x128xi32> to vector<1x128xf32>
    %cst = arith.constant -0.287823141 : f32
    %26 = vector.broadcast %cst : f32 to vector<1x128xf32>
    %27 = arith.mulf %25, %26 : vector<1x128xf32>
    %28 = math.exp %27 : vector<1x128xf32>
    %29 = vector.broadcast %4 : vector<8x1xf32> to vector<8x128xf32>
    %30 = vector.broadcast %28 : vector<1x128xf32> to vector<8x128xf32>
    %31 = arith.mulf %29, %30 : vector<8x128xf32>
    %c1_i32_4 = arith.constant 1 : i32
    %32 = vector.broadcast %c1_i32_4 : i32 to vector<1x128xi32>
    %33 = arith.cmpi eq, %23, %32 : vector<1x128xi32>
    %34 = math.cos %31 : vector<8x128xf32>
    %35 = math.sin %31 : vector<8x128xf32>
    %36 = vector.shape_cast %33 : vector<1x128xi1> to vector<1x128xi1>
    %37 = vector.broadcast %36 : vector<1x128xi1> to vector<8x128xi1>
    %38 = arith.select %37, %34, %35 : vector<8x128xi1>, vector<8x128xf32>
    %c0 = arith.constant 0 : index
    %c0_5 = arith.constant 0 : index
    %39 = vector.load %arg1[%c0, %c0_5] : memref<8x128xf32, #tpu.memory_space<vmem>>, vector<8x128xf32>
    %40 = arith.addf %39, %38 : vector<8x128xf32>
    %c0_6 = arith.constant 0 : index
    %c0_7 = arith.constant 0 : index
    %41 = vector.load %arg2[%c0_6, %c0_7] : memref<8x128xf32, #tpu.memory_space<vmem>>, vector<8x128xf32>
    tpu.vector_store %arg2[%c0_6, %c0_7], %40 {strides = array<i32>} : memref<8x128xf32, #tpu.memory_space<vmem>>, vector<8x128xf32>,
    return
  }
  func.func @transform_0(%arg0: i32) -> (i32, i32) {
    %c0_i32 = arith.constant 0 : i32
    %c0_i32_0 = arith.constant 0 : i32
    return %arg0, %c0_i32 : i32, i32
  }
  func.func @transform_1(%arg0: i32) -> (i32, i32) {
    %c0_i32 = arith.constant 0 : i32
    %c0_i32_0 = arith.constant 0 : i32
    return %arg0, %c0_i32 : i32, i32
  }
}

</mosaic_0001>

<llo_original>
// kernel: tpu_custom_call.1
$region0: #{tpu_custom_call.1}
  #allocation0 [shape = 'u32[]', space=smem, size = 0x4, offset = 0x4, fixed_abs, tag = 'smem constant byte address 0x4 - core index']
  #allocation1 [shape = 'u32[72,128]{1,0:T(1,128)}', space=vmem, size = 0x9000, scoped, tag = 'internal scratch']
  %s0 = inlined_call_operand.hbm [shape: f32[8,128], index: 0, kind: input, shape index: {}]
  %s1 = inlined_call_operand.hbm [shape: f32[8,128], index: 1, kind: output, shape index: {}]
  %s2 = sld [smem:[#allocation0]]
  $region18: #{tpu_custom_call.1} parent=0
    _
  %s4 = ssub.s32 1, %s2
  %s5 = scalar_select 0, %s4, %s2
  $region1: #{tpu_custom_call.1} parent=0
    #allocation2 [shape = 'u8[4096]{0}', space=vmem, size = 0x1000, scoped, tag = 'input window, operand 0, single buffered']
    #allocation3 [shape = 's32[1]{0}', space=sflag, size = 0x4, scoped, tag = 'scoped memory for tpu_custom_call.1']
    #allocation4 [shape = 's32[1]{0}', space=sflag, size = 0x4, scoped, tag = 'scoped memory for tpu_custom_call.1']
    #allocation5 [shape = 'u8[4096]{0}', space=vmem, size = 0x1000, scoped, tag = 'output window, operand 0, single buffered']
    %6 = vsyncpa [#allocation3], 0
    %7 = vsyncpa [#allocation4], 0
    // Predicated region
    $region2: #{tpu_custom_call.1} parent=1 // pred_check
      _
    $region3: #{tpu_custom_call.1} parent=1 // pred_check_branch
      %9 = sbr.rel (0) target = $region5
    $region4: #{tpu_custom_call.1} parent=1 // pred_region
      %11 = vsyncadd [#allocation3], 0
      %s13 = sshll.u32 %s0, 4
      %s14 = int_to_ptr.hbm [resolvable:$true] %s13
      %s15 = sshll.u32 [#allocation2], 4
      %s16 = int_to_ptr.vmem [resolvable:$true] %s15
      %18 = dma.hbm_to_vmem [thread:$0]  %s14, 128, %s16, [#allocation3]
    $region5: #{tpu_custom_call.1} parent=1 // pred_fallthru
      _
    // Predicated region
    $region6: #{tpu_custom_call.1} parent=1 // pred_check
      _
    $region7: #{tpu_custom_call.1} parent=1 // pred_check_branch
      %20 = sbr.rel (0) target = $region9
    $region8: #{tpu_custom_call.1} parent=1 // pred_region
      %22 = dma.done [#allocation3], 128
    $region9: #{tpu_custom_call.1} parent=1 // pred_fallthru
      _
    %s23 = smul.u32 0, 8
    %v24 = vlaneseq
    %v25 = vshrl.u32 %v24, 7
    %v26 = vstv %s23
    %v27 = vadd.s32 %v26, %v25
    %v28 = vcvt.s32.f32 %v27
    %v29 = vlaneseq
    %v30 = vand.u32 %v29, 127
    %vm31 = vcmp.lt.s32.totalorder %v30, 0
    %v32 = vsub.s32 0, %v30
    %v33 = vsel %vm31, %v32, %v30
    %v34 = vshrl.u32 %v33, 5
    %v35 = vand.u32 %v33, 31
    %v36 = vsub.s32 0, %v35
    %v37 = vsel %vm31, %v36, %v35
    %vm38 = vcmp.ne.s32.totalorder %v37, 0
    %vm39 = vcmp.lt.s32.totalorder %v37, 0
    %vm40 = vmand %vm39, %vm38
    %v41 = vadd.s32 %v37, 32
    %v42 = vsel %vm40, %v41, %v37
    %v43 = vand.u32 %v42, 1
    %v44 = vsub.s32 %v42, %v43
    %v45 = vcvt.s32.f32 %v44
    %v46 = vmul.f32 %v45, -0.28782314
    %v47 = vmul.f32 %v46, 1.442695
    %v48 = vpow.pop %v47
    %v49 = vmul.f32 %v28, %v48
    %vm50 = vcmp.eq.s32.totalorder %v43, 1
    %v51 = vand.u32 2147483647, %v49
    %vm52 = vcmp.le.f32.partialorder %v51, 0.7853982
    %vm53 = vcmp.lt.s32.totalorder %v49, 0
    %v54 = vand.u32 %v49, 2139095040
    %v55 = vshrl.u32 %v54, 23
    %v56 = vsub.s32 %v55, 127
    %v57 = vand.u32 2147483647, %v49
    %v58 = vand.u32 %v57, 8388607
    %v59 = vor.u32 %v58, 8388608
    %v60 = vsub.s32 0, %v59
    %v61 = vadd.s32 %v56, 1
    %vm62 = vcmp.gt.s32.totalorder %v61, 0
    %v63 = vsel %vm62, %v61, 0
    %v64 = vshrl.u32 %v63, 5
    %v65 = vand.u32 %v63, 31
    %v66 = vsub.s32 32, %v65
    %v67 = vshrl.u32 683565275, %v66
    %v68 = vshll.u32 683565275, %v65
    %v69 = vshrl.u32 2475754826, %v66
    %v70 = vor.u32 %v68, %v69
    %v71 = vshll.u32 2475754826, %v65
    %v72 = vshrl.u32 2131351028, %v66
    %v73 = vor.u32 %v71, %v72
    %v74 = vshll.u32 2131351028, %v65
    %v75 = vshrl.u32 2102212464, %v66
    %v76 = vor.u32 %v74, %v75
    %v77 = vshll.u32 2102212464, %v65
    %v78 = vshrl.u32 920167782, %v66
    %v79 = vor.u32 %v77, %v78
    %v80 = vshll.u32 920167782, %v65
    %v81 = vshrl.u32 1326507024, %v66
    %v82 = vor.u32 %v80, %v81
    %vm83 = vcmp.lt.s32.totalorder %v64, 1
    %vm84 = vcmp.lt.s32.totalorder %v64, 2
    %vm85 = vcmp.lt.s32.totalorder %v64, 3
    %vm86 = vcmp.lt.s32.totalorder %v64, 4
    %v87 = vsel %vm83, %v67, %v70
    %v88 = vsel %vm86, %v76, 2102212464
    %v89 = vsel %vm85, %v73, %v88
    %v90 = vsel %vm84, %v87, %v89
    %v91 = vsel %vm83, %v70, %v73
    %v92 = vsel %vm86, %v79, 920167782
    %v93 = vsel %vm85, %v76, %v92
    %v94 = vsel %vm84, %v91, %v93
    %v95 = vsel %vm83, %v73, %v76
    %v96 = vsel %vm86, %v82, 1326507024
    %v97 = vsel %vm85, %v79, %v96
    %v98 = vsel %vm84, %v95, %v97
    %v99 = vshll.u32 %v59, 8
    %v100 = vand.u32 %v99, 65535
    %v101 = vshrl.u32 %v99, 16
    %v102 = vand.u32 %v98, 65535
    %v103 = vshrl.u32 %v98, 16
    %v104 = vmul.u32 %v100, %v102
    %v105 = vmul.u32 %v100, %v103
    %v106 = vmul.u32 %v101, %v102
    %v107 = vmul.u32 %v101, %v103
    %v108 = vshll.u32 %v105, 16
    %v109 = vshrl.u32 %v105, 16
    %v110 = vshll.u32 %v106, 16
    %v111 = vshrl.u32 %v106, 16
    %vm112 = vc.u32 %v104, %v108
    %v113 = vsel %vm112, 1, 0
    %v114 = vadd.s32 %v104, %v108
    %v115 = vadd.s32 %v107, %v113
    %vm116 = vc.u32 %v114, %v110
    %v117 = vsel %vm116, 1, 0
    %v118 = vadd.s32 %v114, %v110
    %v119 = vadd.s32 %v115, %v117
    %v120 = vadd.s32 %v119, %v109
    %v121 = vadd.s32 %v120, %v111
    %v122 = vand.u32 %v99, 65535
    %v123 = vshrl.u32 %v99, 16
    %v124 = vand.u32 %v94, 65535
    %v125 = vshrl.u32 %v94, 16
    %v126 = vmul.u32 %v122, %v124
    %v127 = vmul.u32 %v122, %v125
    %v128 = vmul.u32 %v123, %v124
    %v129 = vmul.u32 %v123, %v125
    %v130 = vshll.u32 %v127, 16
    %v131 = vshrl.u32 %v127, 16
    %v132 = vshll.u32 %v128, 16
    %v133 = vshrl.u32 %v128, 16
    %vm134 = vc.u32 %v126, %v130
    %v135 = vsel %vm134, 1, 0
    %v136 = vadd.s32 %v126, %v130
    %v137 = vadd.s32 %v129, %v135
    %vm138 = vc.u32 %v136, %v132
    %v139 = vsel %vm138, 1, 0
    %v140 = vadd.s32 %v136, %v132
    %v141 = vadd.s32 %v137, %v139
    %v142 = vadd.s32 %v141, %v131
    %v143 = vadd.s32 %v142, %v133
    %v144 = vmul.u32 %v99, %v90
    %v145 = vadd.s32 %v121, %v140
    %vm146 = vc.u32 %v121, %v140
    %v147 = vadd.s32 %v143, 1
    %v148 = vsel %vm146, %v147, %v143
    %v149 = vadd.s32 %v144, %v148
    %v150 = vadd.s32 %v149, 536870912
    %v151 = vshrl.u32 %v150, 30
    %v152 = vshll.u32 %v151, 30
    %v153 = vsub.s32 %v149, %v152
    %vm154 = vcmp.lt.s32.totalorder %v153, 0
    %v155 = vsub.s32 0, %v153
    %v156 = vsel %vm154, %v155, %v153
    %v157 = vclz %v156
    %v158 = vsub.s32 %v157, 2
    %vm159 = vcmp.gt.s32.totalorder 0, %v158
    %v160 = vsel %vm159, 0, %v158
    %v161 = vsub.s32 32, %v160
    %v162 = vshll.u32 %v153, %v160
    %v163 = vshrl.u32 %v145, %v161
    %v164 = vor.u32 %v162, %v163
    %v165 = vsub.s32 4294967266, %v160
    %v166 = vadd.s32 %v165, 127
    %v167 = vshll.u32 %v166, 23
    %v168 = vor.u32 4788187, %v167
    %v169 = vand.u32 2147483647, %v168
    %v171 = vcvt.s32.f32 %v164
    %v172 = vmul.f32 %v171, %v169
    %v173 = vxor.u32 %v172, 2147483648
    %v174 = vsel %vm53, %v173, %v172
    %v175 = vsub.s32 4, %v151
    %v176 = vsel %vm53, %v175, %v151
    %v177 = vsel %vm52, %v49, %v174
    %v178 = vsel %vm52, 0, %v176
    %v179 = vmul.f32 %v177, %v177
    %v180 = vmul.f32 %v179, -0.001358992
    %v181 = vadd.f32 %v180, 0.041655596
    %v182 = vmul.f32 %v179, %v181
    %v183 = vadd.f32 %v182, -0.4999988
    %v184 = vmul.f32 %v179, %v183
    %v185 = vadd.f32 1.0, %v184
    %v186 = vmul.f32 %v177, %v177
    %v187 = vmul.f32 %v186, -0.00019511016
    %v188 = vadd.f32 %v187, 0.008332121
    %v189 = vmul.f32 %v186, %v188
    %v190 = vadd.f32 %v189, -0.16666654
    %v191 = vmul.f32 %v186, %v190
    %v192 = vadd.f32 %v191, 1.0
    %v193 = vmul.f32 %v192, %v177
    %vm194 = vweird.f32 %v49
    %v195 = vand.u32 %v178, 3
    %vm196 = vcmp.lt.s32.totalorder %v195, 2
    %vm197 = vcmp.eq.s32.totalorder %v195, 0
    %v198 = vxor.u32 %v193, 2147483648
    %v199 = vsel %vm197, %v185, %v198
    %vm200 = vcmp.eq.s32.totalorder %v195, 2
    %v201 = vxor.u32 %v185, 2147483648
    %v202 = vsel %vm200, %v201, %v193
    %v203 = vsel %vm196, %v199, %v202
    %v204 = vsel %vm194, nan, %v203
    %v205 = vand.u32 2147483647, %v49
    %vm206 = vcmp.le.f32.partialorder %v205, 0.7853982
    %vm207 = vcmp.lt.s32.totalorder %v49, 0
    %v208 = vand.u32 %v49, 2139095040
    %v209 = vshrl.u32 %v208, 23
    %v210 = vsub.s32 %v209, 127
    %v211 = vand.u32 2147483647, %v49
    %v212 = vand.u32 %v211, 8388607
    %v213 = vor.u32 %v212, 8388608
    %v214 = vsub.s32 0, %v213
    %v215 = vadd.s32 %v210, 1
    %vm216 = vcmp.gt.s32.totalorder %v215, 0
    %v217 = vsel %vm216, %v215, 0
    %v218 = vshrl.u32 %v217, 5
    %v219 = vand.u32 %v217, 31
    %v220 = vsub.s32 32, %v219
    %v221 = vshrl.u32 683565275, %v220
    %v222 = vshll.u32 683565275, %v219
    %v223 = vshrl.u32 2475754826, %v220
    %v224 = vor.u32 %v222, %v223
    %v225 = vshll.u32 2475754826, %v219
    %v226 = vshrl.u32 2131351028, %v220
    %v227 = vor.u32 %v225, %v226
    %v228 = vshll.u32 2131351028, %v219
    %v229 = vshrl.u32 2102212464, %v220
    %v230 = vor.u32 %v228, %v229
    %v231 = vshll.u32 2102212464, %v219
    %v232 = vshrl.u32 920167782, %v220
    %v233 = vor.u32 %v231, %v232
    %v234 = vshll.u32 920167782, %v219
    %v235 = vshrl.u32 1326507024, %v220
    %v236 = vor.u32 %v234, %v235
    %vm237 = vcmp.lt.s32.totalorder %v218, 1
    %vm238 = vcmp.lt.s32.totalorder %v218, 2
    %vm239 = vcmp.lt.s32.totalorder %v218, 3
    %vm240 = vcmp.lt.s32.totalorder %v218, 4
    %v241 = vsel %vm237, %v221, %v224
    %v242 = vsel %vm240, %v230, 2102212464
    %v243 = vsel %vm239, %v227, %v242
    %v244 = vsel %vm238, %v241, %v243
    %v245 = vsel %vm237, %v224, %v227
    %v246 = vsel %vm240, %v233, 920167782
    %v247 = vsel %vm239, %v230, %v246
    %v248 = vsel %vm238, %v245, %v247
    %v249 = vsel %vm237, %v227, %v230
    %v250 = vsel %vm240, %v236, 1326507024
    %v251 = vsel %vm239, %v233, %v250
    %v252 = vsel %vm238, %v249, %v251
    %v253 = vshll.u32 %v213, 8
    %v254 = vand.u32 %v253, 65535
    %v255 = vshrl.u32 %v253, 16
    %v256 = vand.u32 %v252, 65535
    %v257 = vshrl.u32 %v252, 16
    %v258 = vmul.u32 %v254, %v256
    %v259 = vmul.u32 %v254, %v257
    %v260 = vmul.u32 %v255, %v256
    %v261 = vmul.u32 %v255, %v257
    %v262 = vshll.u32 %v259, 16
    %v263 = vshrl.u32 %v259, 16
    %v264 = vshll.u32 %v260, 16
    %v265 = vshrl.u32 %v260, 16
    %vm266 = vc.u32 %v258, %v262
    %v267 = vsel %vm266, 1, 0
    %v268 = vadd.s32 %v258, %v262
    %v269 = vadd.s32 %v261, %v267
    %vm270 = vc.u32 %v268, %v264
    %v271 = vsel %vm270, 1, 0
    %v272 = vadd.s32 %v268, %v264
    %v273 = vadd.s32 %v269, %v271
    %v274 = vadd.s32 %v273, %v263
    %v275 = vadd.s32 %v274, %v265
    %v276 = vand.u32 %v253, 65535
    %v277 = vshrl.u32 %v253, 16
    %v278 = vand.u32 %v248, 65535
    %v279 = vshrl.u32 %v248, 16
    %v280 = vmul.u32 %v276, %v278
    %v281 = vmul.u32 %v276, %v279
    %v282 = vmul.u32 %v277, %v278
    %v283 = vmul.u32 %v277, %v279
    %v284 = vshll.u32 %v281, 16
    %v285 = vshrl.u32 %v281, 16
    %v286 = vshll.u32 %v282, 16
    %v287 = vshrl.u32 %v282, 16
    %vm288 = vc.u32 %v280, %v284
    %v289 = vsel %vm288, 1, 0
    %v290 = vadd.s32 %v280, %v284
    %v291 = vadd.s32 %v283, %v289
    %vm292 = vc.u32 %v290, %v286
    %v293 = vsel %vm292, 1, 0
    %v294 = vadd.s32 %v290, %v286
    %v295 = vadd.s32 %v291, %v293
    %v296 = vadd.s32 %v295, %v285
    %v297 = vadd.s32 %v296, %v287
    %v298 = vmul.u32 %v253, %v244
    %v299 = vadd.s32 %v275, %v294
    %vm300 = vc.u32 %v275, %v294
    %v301 = vadd.s32 %v297, 1
    %v302 = vsel %vm300, %v301, %v297
    %v303 = vadd.s32 %v298, %v302
    %v304 = vadd.s32 %v303, 536870912
    %v305 = vshrl.u32 %v304, 30
    %v306 = vshll.u32 %v305, 30
    %v307 = vsub.s32 %v303, %v306
    %vm308 = vcmp.lt.s32.totalorder %v307, 0
    %v309 = vsub.s32 0, %v307
    %v310 = vsel %vm308, %v309, %v307
    %v311 = vclz %v310
    %v312 = vsub.s32 %v311, 2
    %vm313 = vcmp.gt.s32.totalorder 0, %v312
    %v314 = vsel %vm313, 0, %v312
    %v315 = vsub.s32 32, %v314
    %v316 = vshll.u32 %v307, %v314
    %v317 = vshrl.u32 %v299, %v315
    %v318 = vor.u32 %v316, %v317
    %v319 = vsub.s32 4294967266, %v314
    %v320 = vadd.s32 %v319, 127
    %v321 = vshll.u32 %v320, 23
    %v322 = vor.u32 4788187, %v321
    %v323 = vand.u32 2147483647, %v322
    %v325 = vcvt.s32.f32 %v318
    %v326 = vmul.f32 %v325, %v323
    %v327 = vxor.u32 %v326, 2147483648
    %v328 = vsel %vm207, %v327, %v326
    %v329 = vsub.s32 4, %v305
    %v330 = vsel %vm207, %v329, %v305
    %v331 = vsel %vm206, %v49, %v328
    %v332 = vsel %vm206, 0, %v330
    %v333 = vmul.f32 %v331, %v331
    %v334 = vmul.f32 %v333, -0.001358992
    %v335 = vadd.f32 %v334, 0.041655596
    %v336 = vmul.f32 %v333, %v335
    %v337 = vadd.f32 %v336, -0.4999988
    %v338 = vmul.f32 %v333, %v337
    %v339 = vadd.f32 1.0, %v338
    %v340 = vmul.f32 %v331, %v331
    %v341 = vmul.f32 %v340, -0.00019511016
    %v342 = vadd.f32 %v341, 0.008332121
    %v343 = vmul.f32 %v340, %v342
    %v344 = vadd.f32 %v343, -0.16666654
    %v345 = vmul.f32 %v340, %v344
    %v346 = vadd.f32 %v345, 1.0
    %v347 = vmul.f32 %v346, %v331
    %vm348 = vweird.f32 %v49
    %v349 = vadd.s32 %v332, 3
    %v350 = vand.u32 %v349, 3
    %vm351 = vcmp.lt.s32.totalorder %v350, 2
    %vm352 = vcmp.eq.s32.totalorder %v350, 0
    %v353 = vxor.u32 %v347, 2147483648
    %v354 = vsel %vm352, %v339, %v353
    %vm355 = vcmp.eq.s32.totalorder %v350, 2
    %v356 = vxor.u32 %v339, 2147483648
    %v357 = vsel %vm355, %v356, %v347
    %v358 = vsel %vm351, %v354, %v357
    %v359 = vsel %vm348, nan, %v358
    %v360 = vsel %vm50, 1, 0
    %vm361 = vcmp.eq.s32.totalorder %v360, 1
    %v362 = vsel %vm361, %v204, %v359
    %v363 = vld [vmem:[#allocation2] sm:$0xff]
    %v364 = vadd.f32 %v363, %v362
    %365 = vst [vmem:[#allocation5] sm:$0xff] %v364
    // Predicated region
    $region10: #{tpu_custom_call.1} parent=1 // pred_check
      _
    $region11: #{tpu_custom_call.1} parent=1 // pred_check_branch
      %367 = sbr.rel (0) target = $region13
    $region12: #{tpu_custom_call.1} parent=1 // pred_region
      %369 = vsyncadd [#allocation4], 0
      %s371 = sshll.u32 [#allocation5], 4
      %s372 = int_to_ptr.vmem [resolvable:$true] %s371
      %s373 = sshll.u32 %s1, 4
      %s374 = int_to_ptr.hbm [resolvable:$true] %s373
      %376 = dma.vmem_to_hbm [thread:$0]  %s372, 128, %s374, [#allocation4]
    $region13: #{tpu_custom_call.1} parent=1 // pred_fallthru
      _
    // Predicated region
    $region14: #{tpu_custom_call.1} parent=1 // pred_check
      _
    $region15: #{tpu_custom_call.1} parent=1 // pred_check_branch
      %378 = sbr.rel (0) target = $region17
    $region16: #{tpu_custom_call.1} parent=1 // pred_region
      %380 = dma.done [#allocation4], 128
    $region17: #{tpu_custom_call.1} parent=1 // pred_fallthru
      _
    %381 = vsyncpa [#allocation3], 1
    %382 = vsyncpa [#allocation4], 1

</llo_original>
